<compile_context>
chip_gen: v7x
topology: tpu7x:2x2x1
jax: 0.10.0
libtpu: 0.0.40
codegen_flags: <defaults>
</compile_context>

<pallas_src>
import functools

import numpy as np
import jax
import jax.numpy as jnp
from jax.experimental import pallas as pl
from jax.experimental.pallas import tpu as pltpu


def _fp_similarity_kernel(x_ref, lab_ref, out_ref, acc_ref, *,
                          batch, n_lab, neg_weight, tb, nb_per, n_splits, ragged):
    p = pl.program_id(0)            # parallel split (megacore axis on v7x)
    i = pl.program_id(1)            # reduction axis over batch blocks

    @pl.when(i == 0)
    def _init():
        acc_ref[...] = jnp.zeros_like(acc_ref)

    def accumulate(masked):
        # Slice logit column 0 and cast inside the kernel (no wrapper pass over HBM).
        x0 = x_ref[:, 0:1].astype(jnp.float32)                    # [tb, 1]
        lab = lab_ref[...].astype(jnp.float32)                    # [tb, L]

        if masked:
            # Only the globally-last (ragged) block pays for the row mask.
            base = (n_splits * nb_per - 1) * tb
            row = base + jax.lax.broadcasted_iota(jnp.int32, (tb, 1), 0)
            valid = (row < batch).astype(jnp.float32)             # [tb, 1]
            # Neutralize padded rows BEFORE the transcendentals (pad bits may be garbage).
            x0 = jnp.where(valid > 0.0, x0, 0.0)
            lab = jnp.where(valid > 0.0, lab, 0.0)
            lab_sum = lab if n_lab == 1 else jnp.sum(lab, axis=1, keepdims=True)
            neg_cnt = float(n_lab) * valid - lab_sum              # masked (L - sum(lab))
        else:
            lab_sum = lab if n_lab == 1 else jnp.sum(lab, axis=1, keepdims=True)
            neg_cnt = float(n_lab) - lab_sum                      # [tb, 1]

        s = jax.nn.sigmoid(x0)                                    # outs      [tb, 1]
        ns = 1.0 - s                                              # neg_outs  [tb, 1]
        # Factored form: sum_L(lab)*(1-s)*log(s) + w*(L-sum_L(lab))*s*log(1-s)
        contrib = lab_sum * (ns * jnp.log(s)) \
            + neg_weight * neg_cnt * (s * jnp.log(ns))            # [tb, 1]
        acc_ref[...] += contrib                                   # elementwise, no reduce

    if ragged:
        is_last = jnp.logical_and(p == n_splits - 1, i == nb_per - 1)

        @pl.when(is_last)
        def _masked():
            accumulate(True)

        @pl.when(jnp.logical_not(is_last))
        def _unmasked():
            accumulate(False)
    else:
        accumulate(False)

    @pl.when(i == nb_per - 1)
    def _finalize():
        inv_n = 1.0 / float(batch * n_lab)                        # mean over B*L elements
        out_ref[...] = -jnp.sum(acc_ref[...], keepdims=True) * inv_n


def _vmem_capacity_bytes():
    try:
        return int(pltpu.get_tpu_info().vmem_capacity_bytes)
    except Exception:
        return 64 * 1024 * 1024       # conservative (v7x-sized) fallback


def fp_similarity_loss(output, labels, neg_weight=2.0, max_block_b=None):
    """FPSimilarityLoss forward.  output: [B, C] logits, labels: [B, L] (or [B]).

    neg_weight=2.0 -> FPSimilarityLoss; neg_weight=1.0 reproduces FPLoss.
    Returns the scalar loss (f32).
    """
    if labels.ndim == 1:
        labels = labels[:, None]
    B, C = output.shape
    L = labels.shape[1]

    # Only logit column 0 is used: DMA at most the first 128-lane tile of `output`.
    Cb = C if C <= 128 else 128

    out_b = jnp.dtype(output.dtype).itemsize
    lab_b = jnp.dtype(labels.dtype).itemsize

    # Batch tile: fill a generation-aware fraction of VMEM with the double-buffered
    # inputs + the f32 row accumulator.  ~24 MiB working set on v7x (64 MiB VMEM),
    # ~48 MiB on v5e/v6e (128 MiB VMEM).
    vmem_cap = _vmem_capacity_bytes()
    budget = (vmem_cap * 3) // 8
    per_row = 2 * (Cb * out_b + L * lab_b) + 4
    tb = max(budget // per_row, 1)
    if max_block_b is not None:
        tb = min(tb, int(max_block_b))
    # Sublane quantum: 8 for f32, 16 for bf16, 32 for int8/bool blocks.
    quantum = max(32 // out_b, 32 // lab_b, 8)
    if tb >= B:
        tb = B                                     # full-dim block: any B is legal
    else:
        tb = max((tb // quantum) * quantum, quantum)

    nb_total = (B + tb - 1) // tb
    # Leading "parallel" axis so v7x can shard the reduction across both TensorCores
    # (serial and near-free on single-TC v5e/v6e).  Only used when blocks split evenly.
    n_splits = 2 if (nb_total >= 2 and nb_total % 2 == 0) else 1
    nb_per = nb_total // n_splits
    ragged = (B % tb) != 0

    est_vmem = 2 * tb * (Cb * out_b + L * lab_b) + tb * 4 + 4 * n_splits
    vmem_limit = int(min(vmem_cap, max(32 << 20, est_vmem + (16 << 20))))

    kernel = functools.partial(
        _fp_similarity_kernel, batch=B, n_lab=L, neg_weight=float(neg_weight),
        tb=tb, nb_per=nb_per, n_splits=n_splits, ragged=ragged)

    partials = pl.pallas_call(
        kernel,
        out_shape=jax.ShapeDtypeStruct((n_splits, 1), jnp.float32),
        grid_spec=pltpu.PrefetchScalarGridSpec(
            num_scalar_prefetch=0,
            grid=(n_splits, nb_per),
            in_specs=[
                pl.BlockSpec((tb, Cb), lambda p, i: (p * nb_per + i, 0)),  # logits rows
                pl.BlockSpec((tb, L), lambda p, i: (p * nb_per + i, 0)),   # label rows
            ],
            out_specs=pl.BlockSpec((1, 1), lambda p, i: (p, 0)),           # per-split partial
            scratch_shapes=[pltpu.VMEM((tb, 1), jnp.float32)],             # row accumulator
        ),
        compiler_params=pltpu.CompilerParams(
            dimension_semantics=("parallel", "arbitrary"),
            vmem_limit_bytes=vmem_limit),
    )(output, labels)
    return jnp.sum(partials)


def _reference_numpy(output, labels, neg_weight=2.0):
    """Pure-numpy float64 transcription of the torch forward."""
    out = np.asarray(output, np.float64)
    lab = np.asarray(labels, np.float64)
    if lab.ndim == 1:
        lab = lab[:, None]
    sig = 1.0 / (1.0 + np.exp(-out[:, :1]))
    ns = 1.0 - sig
    h_pos = ns * (lab * np.log(sig))
    h_neg = sig * ((1.0 - lab) * np.log(ns))
    return float(-h_pos.mean() - neg_weight * h_neg.mean())
    # TODO(synk): the torch `if fpcls.item() is np.nan: pdb.set_trace()` host debug hook has
    # no kernel equivalent (and is a no-op in torch as well); intentionally omitted.


if __name__ == "__main__":
    key = jax.random.PRNGKey(0)
    k1, k2, k3, k4, k5, k6, k7, k8, k9, k10 = jax.random.split(key, 10)

    # Case 1: tiny shapes, single full-batch block (auto tile).
    B, C = 16, 4
    output = jax.random.normal(k1, (B, C), dtype=jnp.float32)
    labels = (jax.random.uniform(k2, (B, 1)) > 0.5).astype(jnp.float32)
    loss = jax.block_until_ready(fp_similarity_loss(output, labels))
    ref = _reference_numpy(np.array(output), np.array(labels))
    assert abs(float(loss) - ref) < 1e-4, (float(loss), ref)

    # Case 2: multi-block, even split (2-way parallel axis) with ragged last block.
    B2, C2 = 13, 6
    output2 = jax.random.normal(k3, (B2, C2), dtype=jnp.float32)
    labels2 = (jax.random.uniform(k4, (B2, 1)) > 0.5).astype(jnp.float32)
    loss2 = jax.block_until_ready(fp_similarity_loss(output2, labels2, max_block_b=8))
    ref2 = _reference_numpy(np.array(output2), np.array(labels2))
    assert abs(float(loss2) - ref2) < 1e-4, (float(loss2), ref2)

    # Case 3: multi-label (L=3, exercises the L-factoring), odd block count, ragged.
    B3, C3, L3 = 20, 4, 3
    output3 = jax.random.normal(k5, (B3, C3), dtype=jnp.float32)
    labels3 = (jax.random.uniform(k6, (B3, L3)) > 0.5).astype(jnp.float32)
    loss3 = jax.block_until_ready(fp_similarity_loss(output3, labels3, max_block_b=8))
    ref3 = _reference_numpy(np.array(output3), np.array(labels3))
    assert abs(float(loss3) - ref3) < 1e-4, (float(loss3), ref3)

    # Case 4: C > 128 exercises the narrowed (tb, 128) logits BlockSpec.
    B4, C4 = 12, 200
    output4 = jax.random.normal(k7, (B4, C4), dtype=jnp.float32)
    labels4 = (jax.random.uniform(k8, (B4, 1)) > 0.5).astype(jnp.float32)
    loss4 = jax.block_until_ready(fp_similarity_loss(output4, labels4))
    ref4 = _reference_numpy(np.array(output4), np.array(labels4))
    assert abs(float(loss4) - ref4) < 1e-4, (float(loss4), ref4)

    # Case 5: bf16 logits pass straight through (cast to f32 happens in-kernel).
    B5, C5 = 8, 4
    output5 = jax.random.normal(k9, (B5, C5), dtype=jnp.bfloat16)
    labels5 = (jax.random.uniform(k10, (B5, 1)) > 0.5).astype(jnp.float32)
    loss5 = jax.block_until_ready(fp_similarity_loss(output5, labels5))
    ref5 = _reference_numpy(np.array(output5.astype(jnp.float32)), np.array(labels5))
    assert abs(float(loss5) - ref5) < 5e-3, (float(loss5), ref5)

    print("KERNEL_OK")
</pallas_src>

<mosaic_0001>
module attributes {stable_mosaic.version = 11 : i64} {
  func.func @_fp_similarity_kernel(%arg0: i32, %arg1: i32, %arg2: memref<16x4xf32, #tpu.memory_space<vmem>>, %arg3: memref<16x1xf32, #tpu.memory_space<vmem>>, %arg4: memref<1x1xf32, #tpu.memory_space<vmem>>, %arg5: memref<16x1xf32, #tpu.memory_space<vmem>>) attributes {dimension_semantics = [#tpu.dimension_semantics<parallel>, #tpu.dimension_semantics<arbitrary>], iteration_bounds = array<i64: 1, 1>, scalar_prefetch = 0 : i64, scratch_operands = 1 : i64, tpu.core_type = #tpu.core_type<tc>, window_params = [{transform_indices = @transform_0, window_bounds = array<i64: 16, 4>}, {transform_indices = @transform_1, window_bounds = array<i64: 16, 1>}, {transform_indices = @transform_2, window_bounds = array<i64: 1, 1>}]} {
    %c0_i32 = arith.constant 0 : i32
    %0 = arith.cmpi eq, %arg1, %c0_i32 : i32
    %1 = arith.extui %0 : i1 to i32
    %c0_i32_0 = arith.constant 0 : i32
    %2 = arith.cmpi ne, %1, %c0_i32_0 : i32
    scf.if %2 {
      %cst_13 = arith.constant 0.000000e+00 : f32
      %29 = vector.broadcast %cst_13 : f32 to vector<16x1xf32>
      %c0_14 = arith.constant 0 : index
      %c0_15 = arith.constant 0 : index
      %30 = vector.load %arg5[%c0_14, %c0_15] : memref<16x1xf32, #tpu.memory_space<vmem>>, vector<16x1xf32>
      tpu.vector_store %arg5[%c0_14, %c0_15], %29 {strides = array<i32>} : memref<16x1xf32, #tpu.memory_space<vmem>>, vector<16x1xf32>,
    } else {
    }
    %c0 = arith.constant 0 : index
    %c0_1 = arith.constant 0 : index
    %3 = vector.load %arg2[%c0, %c0_1] : memref<16x4xf32, #tpu.memory_space<vmem>>, vector<16x1xf32>
    %c0_2 = arith.constant 0 : index
    %c0_3 = arith.constant 0 : index
    %4 = vector.load %arg3[%c0_2, %c0_3] : memref<16x1xf32, #tpu.memory_space<vmem>>, vector<16x1xf32>
    %cst = arith.constant 1.000000e+00 : f32
    %5 = vector.broadcast %cst : f32 to vector<16x1xf32>
    %6 = arith.subf %5, %4 : vector<16x1xf32>
    %7 = arith.negf %3 : vector<16x1xf32>
    %8 = math.exp %7 : vector<16x1xf32>
    %cst_4 = arith.constant 1.000000e+00 : f32
    %9 = vector.broadcast %cst_4 : f32 to vector<16x1xf32>
    %10 = arith.addf %9, %8 : vector<16x1xf32>
    %11 = arith.divf %9, %10 : vector<16x1xf32>
    %cst_5 = arith.constant 1.000000e+00 : f32
    %12 = vector.broadcast %cst_5 : f32 to vector<16x1xf32>
    %13 = arith.subf %12, %11 : vector<16x1xf32>
    %14 = math.log %11 : vector<16x1xf32>
    %15 = arith.mulf %13, %14 : vector<16x1xf32>
    %16 = arith.mulf %4, %15 : vector<16x1xf32>
    %cst_6 = arith.constant 2.000000e+00 : f32
    %17 = vector.broadcast %cst_6 : f32 to vector<16x1xf32>
    %18 = arith.mulf %17, %6 : vector<16x1xf32>
    %19 = math.log %13 : vector<16x1xf32>
    %20 = arith.mulf %11, %19 : vector<16x1xf32>
    %21 = arith.mulf %18, %20 : vector<16x1xf32>
    %22 = arith.addf %16, %21 : vector<16x1xf32>
    %c0_7 = arith.constant 0 : index
    %c0_8 = arith.constant 0 : index
    %23 = vector.load %arg5[%c0_7, %c0_8] : memref<16x1xf32, #tpu.memory_space<vmem>>, vector<16x1xf32>
    %24 = arith.addf %23, %22 : vector<16x1xf32>
    %c0_9 = arith.constant 0 : index
    %c0_10 = arith.constant 0 : index
    %25 = vector.load %arg5[%c0_9, %c0_10] : memref<16x1xf32, #tpu.memory_space<vmem>>, vector<16x1xf32>
    tpu.vector_store %arg5[%c0_9, %c0_10], %24 {strides = array<i32>} : memref<16x1xf32, #tpu.memory_space<vmem>>, vector<16x1xf32>,
    %c0_i32_11 = arith.constant 0 : i32
    %26 = arith.cmpi eq, %arg1, %c0_i32_11 : i32
    %27 = arith.extui %26 : i1 to i32
    %c0_i32_12 = arith.constant 0 : i32
    %28 = arith.cmpi ne, %27, %c0_i32_12 : i32
    scf.if %28 {
      %c0_13 = arith.constant 0 : index
      %c0_14 = arith.constant 0 : index
      %29 = vector.load %arg5[%c0_13, %c0_14] : memref<16x1xf32, #tpu.memory_space<vmem>>, vector<16x1xf32>
      %30 = vector.shape_cast %29 : vector<16x1xf32> to vector<1x16x1xf32>
      %cst_15 = arith.constant dense<0.000000e+00> : vector<1xf32>
      %31 = vector.multi_reduction <add>, %30, %cst_15 [1, 2] : vector<1x16x1xf32> to vector<1xf32>
      %32 = vector.shape_cast %31 : vector<1xf32> to vector<1x1x1xf32>
      %33 = vector.extract %32[0, 0, 0] : f32 from vector<1x1x1xf32>
      %34 = vector.broadcast %33 : f32 to vector<1x1xf32>
      %cst_16 = arith.constant 0.000000e+00 : f32
      %35 = vector.broadcast %cst_16 : f32 to vector<1x1xf32>
      %36 = arith.subf %35, %34 : vector<1x1xf32>
      %cst_17 = arith.constant 6.250000e-02 : f32
      %37 = vector.broadcast %cst_17 : f32 to vector<1x1xf32>
      %38 = arith.mulf %36, %37 : vector<1x1xf32>
      %c0_18 = arith.constant 0 : index
      %c0_19 = arith.constant 0 : index
      %39 = vector.load %arg4[%c0_18, %c0_19] : memref<1x1xf32, #tpu.memory_space<vmem>>, vector<1x1xf32>
      tpu.vector_store %arg4[%c0_18, %c0_19], %38 {strides = array<i32>} : memref<1x1xf32, #tpu.memory_space<vmem>>, vector<1x1xf32>,
    } else {
    }
    return
  }
  func.func @transform_0(%arg0: i32, %arg1: i32) -> (i32, i32) {
    %c1_i32 = arith.constant 1 : i32
    %0 = arith.muli %arg0, %c1_i32 : i32
    %1 = arith.addi %0, %arg1 : i32
    %c0_i32 = arith.constant 0 : i32
    %c0_i32_0 = arith.constant 0 : i32
    return %1, %c0_i32 : i32, i32
  }
  func.func @transform_1(%arg0: i32, %arg1: i32) -> (i32, i32) {
    %c1_i32 = arith.constant 1 : i32
    %0 = arith.muli %arg0, %c1_i32 : i32
    %1 = arith.addi %0, %arg1 : i32
    %c0_i32 = arith.constant 0 : i32
    %c0_i32_0 = arith.constant 0 : i32
    return %1, %c0_i32 : i32, i32
  }
  func.func @transform_2(%arg0: i32, %arg1: i32) -> (i32, i32) {
    %c0_i32 = arith.constant 0 : i32
    %c0_i32_0 = arith.constant 0 : i32
    return %arg0, %c0_i32 : i32, i32
  }
}

</mosaic_0001>

<llo_original>
// kernel: tpu_custom_call.1
$region0: #{tpu_custom_call.1}
  #allocation0 [shape = 'u32[]', space=smem, size = 0x4, offset = 0x4, fixed_abs, tag = 'smem constant byte address 0x4 - core index']
  #allocation1 [shape = 'u32[144,128]{1,0:T(1,128)}', space=vmem, size = 0x12000, scoped, tag = 'internal scratch']
  #allocation2 [shape = 'f32[16,1]{1,0:T(8,128)}', space=vmem, size = 0x2000, scoped, tag = 'scratch operand']
  %s0 = inlined_call_operand.vmem [shape: f32[16,4], index: 0, kind: input, shape index: {}]
  %s1 = inlined_call_operand.vmem [shape: f32[16,1], index: 1, kind: input, shape index: {}]
  %s2 = inlined_call_operand.hbm [shape: f32[1,1], index: 2, kind: output, shape index: {}]
  %s3 = sld [smem:[#allocation0]]
  $region26: #{tpu_custom_call.1} parent=0
    _
  %s5 = ssub.s32 1, %s3
  %s6 = scalar_select 0, %s5, %s3
  $region1: #{tpu_custom_call.1} parent=0
    #allocation3 [shape = 'u8[512]{0}', space=vmem, size = 0x400, scoped, tag = 'output window, operand 0, single buffered']
    #allocation4 [shape = 's32[1]{0}', space=sflag, size = 0x4, scoped, tag = 'scoped memory for tpu_custom_call.1']
    %7 = vsyncpa [#allocation4], 0
    // Predicated region
    $region2: #{tpu_custom_call.1} parent=1 // pred_check
      _
    $region3: #{tpu_custom_call.1} parent=1 // pred_check_branch
      %9 = sbr.rel (0) target = $region5
    $region4: #{tpu_custom_call.1} parent=1 // pred_region
      %s10 = sadd.s32 0, 0
      %s11 = smul.u32 2, %s10
      %p12 = scmp.lt.s32.totalorder %s11, 1
      %s13 = scalar_select %p12, %s11, 1
      %s14 = smul.addr %s13, 8
      %s15 = scalar_lea.vmem %s0, %s14
      %s16 = sadd.s32 0, 0
      %s17 = smul.u32 2, %s16
    $region5: #{tpu_custom_call.1} parent=1 // pred_fallthru
      _
    // Predicated region
    $region6: #{tpu_custom_call.1} parent=1 // pred_check
      _
    $region7: #{tpu_custom_call.1} parent=1 // pred_check_branch
      %19 = sbr.rel (0) target = $region9
    $region8: #{tpu_custom_call.1} parent=1 // pred_region
      %s20 = sadd.s32 0, 0
      %s21 = smul.u32 2, %s20
      %p22 = scmp.lt.s32.totalorder %s21, 1
      %s23 = scalar_select %p22, %s21, 1
      %s24 = smul.addr %s23, 8
      %s25 = scalar_lea.vmem %s1, %s24
      %s26 = sadd.s32 0, 0
      %s27 = smul.u32 2, %s26
    $region9: #{tpu_custom_call.1} parent=1 // pred_fallthru
      _
    %s28 = sadd.s32 0, 0
    %s29 = smul.u32 2, %s28
    %p30 = scmp.lt.s32.totalorder %s29, 1
    %s31 = scalar_select %p30, %s29, 1
    %s32 = smul.addr %s31, 8
    %s33 = scalar_lea.vmem %s0, %s32
    %s34 = sadd.s32 0, 0
    %s35 = smul.u32 2, %s34
    %p36 = scmp.lt.s32.totalorder %s35, 1
    %s37 = scalar_select %p36, %s35, 1
    %s38 = smul.addr %s37, 8
    %s39 = scalar_lea.vmem %s1, %s38
    %s40 = sadd.s32 0, 0
    %s41 = smul.u32 2, %s40
    %p42 = scmp.lt.s32.totalorder %s41, 1
    %s43 = scalar_select %p42, %s41, 1
    %s44 = smul.addr %s43, 8
    %s45 = scalar_lea.vmem %s0, %s44
    %s46 = sadd.s32 0, 0
    %s47 = smul.u32 2, %s46
    %s48 = sadd.s32 0, 0
    %s49 = smul.u32 2, %s48
    %p50 = scmp.lt.s32.totalorder %s49, 1
    %s51 = scalar_select %p50, %s49, 1
    %s52 = smul.addr %s51, 8
    %s53 = scalar_lea.vmem %s1, %s52
    %s54 = sadd.s32 0, 0
    %s55 = smul.u32 2, %s54
    %p56 = scmp.eq.s32.totalorder 0, 0
    // Predicated region
    $region10: #{tpu_custom_call.1} parent=1 // pred_check
      %p57 = pneg %p56
    $region11: #{tpu_custom_call.1} parent=1 // pred_check_branch
      %59 = sbr.rel (%p57) target = $region13
    $region12: #{tpu_custom_call.1} parent=1 // pred_region
      %vm60 = vcmask 7168
      %61 = vst.msk [vmem:[#allocation2] sm:$0xff] %vm60, 0.0
      %62 = vst.msk [vmem:[#allocation2 + $0x8] sm:$0xff] %vm60, 0.0
    $region13: #{tpu_custom_call.1} parent=1 // pred_fallthru
      _
    %v63 = vld [vmem:[%s45] sm:$0xff]
    %v64 = vld [vmem:[%s45 + $0x8] sm:$0xff]
    %v65 = vld [vmem:[%s53] sm:$0xff]
    %v66 = vld [vmem:[%s53 + $0x8] sm:$0xff]
    %v67 = vsub.f32 1.0, %v65
    %v68 = vsub.f32 1.0, %v66
    %v69 = vxor.u32 %v63, 2147483648
    %v70 = vxor.u32 %v64, 2147483648
    %v71 = vmul.f32 %v69, 1.442695
    %v72 = vpow.pop %v71
    %v73 = vmul.f32 %v70, 1.442695
    %v74 = vpow.pop %v73
    %v75 = vadd.f32 %v72, 1.0
    %v76 = vadd.f32 %v74, 1.0
    %v77 = vrcp.pop %v75
    %v78 = vmul.f32 1.0, %v77
    %v79 = vrcp.pop %v76
    %v80 = vmul.f32 1.0, %v79
    %v81 = vsub.f32 1.0, %v78
    %v82 = vsub.f32 1.0, %v80
    %v83 = vlog2.pop %v78
    %v84 = vmul.f32 %v83, 0.6931472
    %v85 = vlog2.pop %v80
    %v86 = vmul.f32 %v85, 0.6931472
    %v87 = vmul.f32 %v81, %v84
    %v88 = vmul.f32 %v82, %v86
    %v89 = vmul.f32 %v65, %v87
    %v90 = vmul.f32 %v66, %v88
    %v91 = vmul.f32 %v67, 2.0
    %v92 = vmul.f32 %v68, 2.0
    %v93 = vlog2.pop %v81
    %v94 = vmul.f32 %v93, 0.6931472
    %v95 = vlog2.pop %v82
    %v96 = vmul.f32 %v95, 0.6931472
    %v97 = vmul.f32 %v78, %v94
    %v98 = vmul.f32 %v80, %v96
    %v99 = vmul.f32 %v91, %v97
    %v100 = vmul.f32 %v92, %v98
    %v101 = vadd.f32 %v89, %v99
    %v102 = vadd.f32 %v90, %v100
    %v103 = vld [vmem:[#allocation2] sm:$0xff]
    %v104 = vld [vmem:[#allocation2 + $0x8] sm:$0xff]
    %v105 = vadd.f32 %v103, %v101
    %v106 = vadd.f32 %v104, %v102
    %vm107 = vcmask 7168
    %108 = vst.msk [vmem:[#allocation2] sm:$0xff] %vm107, %v105
    %109 = vst.msk [vmem:[#allocation2 + $0x8] sm:$0xff] %vm107, %v106
    // Predicated region
    $region14: #{tpu_custom_call.1} parent=1 // pred_check
      %p110 = pneg %p56
    $region15: #{tpu_custom_call.1} parent=1 // pred_check_branch
      %112 = sbr.rel (%p110) target = $region17
    $region16: #{tpu_custom_call.1} parent=1 // pred_region
      %v113 = vld [vmem:[#allocation2] sm:$0xff]
      %v114 = vld [vmem:[#allocation2 + $0x8] sm:$0xff]
      %v115 = vsel %vm107, %v113, 0.0
      %v116 = vsel %vm107, %v114, 0.0
      %v117 = vadd.f32 %v115, %v116
      %118 = vadd.xlane.f32.xlu0 %v117
      %v119 = vpop.xlane.xlu0 %118
      %v120 = vrot.slane %v119, 4
      %v121 = vadd.f32 %v119, %v120
      %v122 = vrot.slane %v121, 2
      %v123 = vadd.f32 %v121, %v122
      %v124 = vrot.slane %v123, 1
      %v125 = vadd.f32 %v123, %v124
      %s126 = vtos %v125
      %v127 = vstv %s126
      %v128 = vsub.f32 0.0, %v127
      %v129 = vmul.f32 %v128, 0.0625
      %vm130 = vcmask 0
      %131 = vst.msk [vmem:[#allocation3] sm:$0x1] %vm130, %v129
    $region17: #{tpu_custom_call.1} parent=1 // pred_fallthru
      _
    // Predicated region
    $region18: #{tpu_custom_call.1} parent=1 // pred_check
      _
    $region19: #{tpu_custom_call.1} parent=1 // pred_check_branch
      %133 = sbr.rel (0) target = $region21
    $region20: #{tpu_custom_call.1} parent=1 // pred_region
      %s135 = ssub.s32 16, 16
      %136 = vsyncadd [#allocation4], %s135
      %s138 = sshll.u32 [#allocation3], 4
      %s139 = int_to_ptr.vmem [resolvable:$true] %s138
      %141 = dma.vmem_to_hbm [thread:$0]  %s139, 16, %s2, [#allocation4]
    $region21: #{tpu_custom_call.1} parent=1 // pred_fallthru
      _
    // Predicated region
    $region22: #{tpu_custom_call.1} parent=1 // pred_check
      _
    $region23: #{tpu_custom_call.1} parent=1 // pred_check_branch
      %143 = sbr.rel (0) target = $region25
    $region24: #{tpu_custom_call.1} parent=1 // pred_region
      %144 = dma.done [#allocation4], 16
    $region25: #{tpu_custom_call.1} parent=1 // pred_fallthru
      _
    %145 = vsyncpa [#allocation4], 1

</llo_original>
